<compile_context>
chip_gen: v5e
topology: v5e:2x2
jax: 0.10.0
libtpu: 0.0.40
codegen_flags: <defaults>
</compile_context>

<pallas_src>
import functools

import jax
import jax.numpy as jnp
from jax.experimental import pallas as pl
from jax.experimental.pallas import tpu as pltpu

MEAN_PAD = 8  # pad the 2-wide `mean` features up to one sublane tile


def _round_up(x, m):
    return ((x + m - 1) // m) * m


def _softplus(x):
    # Numerically stable softplus: log(1 + exp(x)) (matches F.softplus within fp tolerance)
    return jnp.maximum(x, 0.0) + jnp.log1p(jnp.exp(-jnp.abs(x)))


def _autoencoder_kernel(x_ref, mean_ref, w_ref, b_ref, out_ref, *, input_dim, seg):
    """Transposed-layout fused MLP.

    x_ref:    (input_dim, bt)   batch on lanes
    mean_ref: (MEAN_PAD, bt)    rows >= 2 are zero
    w_ref:    (R, total_lanes)  packed weights, 128-aligned lane segments, (out, in) layout
    b_ref:    (R, 5)            bias columns [be0, be1, b_fused, bd1, bd2]
    out_ref:  (input_dim, bt)
    """
    X = x_ref[...]
    M = mean_ref[...]

    # Static slices of the VMEM-resident parameter pack (free).
    w0 = w_ref[0:32, seg["e0"]:seg["e0"] + input_dim]   # (32, input_dim)
    w1 = w_ref[0:32, seg["e1"]:seg["e1"] + 32]          # (32, 32)
    wf = w_ref[0:32, seg["f"]:seg["f"] + 32]            # (32, 32)  fused enc-out/dec-in
    wm = w_ref[0:32, seg["m"]:seg["m"] + MEAN_PAD]      # (32, 8)   mean part (cols >=2 zero)
    w4 = w_ref[0:32, seg["d1"]:seg["d1"] + 32]          # (32, 32)
    w5 = w_ref[0:input_dim, seg["d2"]:seg["d2"] + 32]   # (input_dim, 32)

    b0 = b_ref[0:32, 0:1]
    b1 = b_ref[0:32, 1:2]
    bf = b_ref[0:32, 2:3]
    b4 = b_ref[0:32, 3:4]
    b5 = b_ref[0:input_dim, 4:5]

    f32 = jnp.float32
    h = _softplus(jnp.dot(w0, X, preferred_element_type=f32) + b0)
    h = _softplus(jnp.dot(w1, h, preferred_element_type=f32) + b1)
    # fused: softplus(z @ wd0[:H] + mean @ wd0[H:] + bd0) with z = h @ we2 + be2
    d = _softplus(jnp.dot(wf, h, preferred_element_type=f32)
                  + jnp.dot(wm, M, preferred_element_type=f32)
                  + bf)
    d = _softplus(jnp.dot(w4, d, preferred_element_type=f32) + b4)
    y = jnp.dot(w5, d, preferred_element_type=f32) + b5

    out_ref[...] = y.astype(out_ref.dtype)


@functools.partial(jax.jit, static_argnames=("hidden_dim", "batch_tile"))
def autoencoder_forward(x, mean, weights, biases, *, hidden_dim, batch_tile=512):
    B, input_dim = x.shape
    H = hidden_dim
    we0, we1, we2, wd0, wd1, wd2 = weights
    be0, be1, be2, bd0, bd1, bd2 = biases

    # ---- algebraic fusion of encoder-out + decoder-in (exact) ----
    wd0h = wd0[:H, :]            # (H, 32)
    wd0m = wd0[H:, :]            # (2, 32)
    w_fused = we2 @ wd0h         # (32, 32)
    b_fused = be2 @ wd0h + bd0   # (1, 32)

    # ---- transpose weights to (out, in) so batch rides the lane axis ----
    w0t = we0.T                  # (32, input_dim)
    w1t = we1.T                  # (32, 32)
    wft = w_fused.T              # (32, 32)
    wmt_pad = jnp.zeros((32, MEAN_PAD), jnp.float32).at[:, :2].set(wd0m.T)  # (32, 8)
    w4t = wd1.T                  # (32, 32)
    w5t = wd2.T                  # (input_dim, 32)

    R = _round_up(max(32, input_dim), 8)

    # ---- pack all weights into one array; each segment starts 128-lane aligned ----
    segs = [("e0", w0t), ("e1", w1t), ("f", wft), ("m", wmt_pad), ("d1", w4t), ("d2", w5t)]
    offsets, cols = {}, 0
    for name, w in segs:
        offsets[name] = cols
        cols += _round_up(w.shape[1], 128)
    wpack = jnp.zeros((R, cols), jnp.float32)
    for name, w in segs:
        o = offsets[name]
        wpack = wpack.at[:w.shape[0], o:o + w.shape[1]].set(w)

    # ---- pack biases as columns of one (R, 5) array ----
    bpack = jnp.zeros((R, 5), jnp.float32)
    for k, (b, n) in enumerate(
        [(be0, 32), (be1, 32), (b_fused, 32), (bd1, 32), (bd2, input_dim)]
    ):
        bpack = bpack.at[:n, k].set(b.reshape(-1))

    # ---- batch tiling: batch on lanes, padded to a lane-dense tile ----
    bt = min(batch_tile, _round_up(B, 128))       # multiple of 128
    Bp = _round_up(B, bt)
    xt = jnp.zeros((input_dim, Bp), jnp.float32).at[:, :B].set(x.T)
    mt = jnp.zeros((MEAN_PAD, Bp), jnp.float32).at[:2, :B].set(mean.T)

    kernel = functools.partial(_autoencoder_kernel, input_dim=input_dim, seg=offsets)

    out_t = pl.pallas_call(
        kernel,
        out_shape=jax.ShapeDtypeStruct((input_dim, Bp), jnp.float32),
        grid=(Bp // bt,),
        in_specs=[
            pl.BlockSpec((input_dim, bt), lambda i: (0, i)),
            pl.BlockSpec((MEAN_PAD, bt), lambda i: (0, i)),
            pl.BlockSpec(wpack.shape, lambda i: (0, 0)),   # VMEM-resident across grid
            pl.BlockSpec(bpack.shape, lambda i: (0, 0)),
        ],
        out_specs=pl.BlockSpec((input_dim, bt), lambda i: (0, i)),
        compiler_params=pltpu.CompilerParams(
            dimension_semantics=("parallel",)),
    )(xt, mt, wpack, bpack)

    return out_t[:, :B].T                          # back to (B, input_dim)


# ---------------------------------------------------------------------------
# Parameter init (matches the PyTorch module: xavier_uniform_ weights,
# default Linear bias init) and a pure-JAX reference for correctness.
# ---------------------------------------------------------------------------
def _xavier_uniform(key, fan_in, fan_out):
    bound = (6.0 / (fan_in + fan_out)) ** 0.5
    return jax.random.uniform(key, (fan_in, fan_out), jnp.float32, -bound, bound)


def _default_bias(key, fan_in, fan_out):
    bound = 1.0 / (fan_in ** 0.5)
    return jax.random.uniform(key, (1, fan_out), jnp.float32, -bound, bound)


def init_autoencoder_params(key, input_dim, hidden_dim):
    dims = [
        (input_dim, 32), (32, 32), (32, hidden_dim),          # encoder_net
        (hidden_dim + 2, 32), (32, 32), (32, input_dim),      # decoder_net
    ]
    keys = jax.random.split(key, 2 * len(dims))
    weights, biases = [], []
    for i, (fi, fo) in enumerate(dims):
        weights.append(_xavier_uniform(keys[2 * i], fi, fo))
        biases.append(_default_bias(keys[2 * i + 1], fi, fo))
    return weights, biases


def autoencoder_reference(x, mean, weights, biases):
    we0, we1, we2, wd0, wd1, wd2 = weights
    be0, be1, be2, bd0, bd1, bd2 = biases
    sp = jax.nn.softplus
    h = sp(x @ we0 + be0)
    h = sp(h @ we1 + be1)
    z = h @ we2 + be2
    z = jnp.concatenate([z, mean], axis=-1)
    d = sp(z @ wd0 + bd0)
    d = sp(d @ wd1 + bd1)
    return d @ wd2 + bd2


if __name__ == "__main__":
    B = 8
    INPUT_DIM = 16
    HIDDEN_DIM = 4

    key = jax.random.PRNGKey(0)
    kx, km, kp = jax.random.split(key, 3)

    x = jax.random.normal(kx, (B, INPUT_DIM), jnp.float32)
    mean = jax.random.normal(km, (B, 2), jnp.float32)

    weights, biases = init_autoencoder_params(kp, INPUT_DIM, HIDDEN_DIM)

    out = autoencoder_forward(x, mean, weights, biases, hidden_dim=HIDDEN_DIM)
    out = jax.block_until_ready(out)

    ref = autoencoder_reference(x, mean, weights, biases)
    assert out.shape == (B, INPUT_DIM)
    # fusion (we2 @ wd0[:H]) reorders float ops -> slightly looser tolerance than 1e-5
    assert jnp.allclose(out, ref, atol=1e-4, rtol=1e-4), "Pallas output mismatch vs reference"

    print("KERNEL_OK")
</pallas_src>

<mosaic_0001>
module attributes {stable_mosaic.version = 11 : i64} {
  func.func @_autoencoder_kernel(%arg0: i32, %arg1: memref<16x128xf32, #tpu.memory_space<vmem>>, %arg2: memref<8x128xf32, #tpu.memory_space<vmem>>, %arg3: memref<32x768xf32, #tpu.memory_space<vmem>>, %arg4: memref<32x5xf32, #tpu.memory_space<vmem>>, %arg5: memref<16x128xf32, #tpu.memory_space<vmem>>) attributes {dimension_semantics = [#tpu.dimension_semantics<parallel>], iteration_bounds = array<i64: 1>, scalar_prefetch = 0 : i64, scratch_operands = 0 : i64, tpu.core_type = #tpu.core_type<tc>, window_params = [{transform_indices = @transform_0, window_bounds = array<i64: 16, 128>}, {transform_indices = @transform_1, window_bounds = array<i64: 8, 128>}, {pipeline_mode = #tpu.pipeline_mode<synchronous>, transform_indices = @transform_2, window_bounds = array<i64: 32, 768>}, {pipeline_mode = #tpu.pipeline_mode<synchronous>, transform_indices = @transform_3, window_bounds = array<i64: 32, 5>}, {transform_indices = @transform_4, window_bounds = array<i64: 16, 128>}]} {
    %c0 = arith.constant 0 : index
    %c0_0 = arith.constant 0 : index
    %0 = vector.load %arg1[%c0, %c0_0] : memref<16x128xf32, #tpu.memory_space<vmem>>, vector<16x128xf32>
    %c0_1 = arith.constant 0 : index
    %c0_2 = arith.constant 0 : index
    %1 = vector.load %arg2[%c0_1, %c0_2] : memref<8x128xf32, #tpu.memory_space<vmem>>, vector<8x128xf32>
    %c0_3 = arith.constant 0 : index
    %c0_4 = arith.constant 0 : index
    %2 = vector.load %arg3[%c0_3, %c0_4] : memref<32x768xf32, #tpu.memory_space<vmem>>, vector<32x16xf32>
    %c0_5 = arith.constant 0 : index
    %c128 = arith.constant 128 : index
    %3 = vector.load %arg3[%c0_5, %c128] : memref<32x768xf32, #tpu.memory_space<vmem>>, vector<32x32xf32>
    %c0_6 = arith.constant 0 : index
    %c256 = arith.constant 256 : index
    %4 = vector.load %arg3[%c0_6, %c256] : memref<32x768xf32, #tpu.memory_space<vmem>>, vector<32x32xf32>
    %c0_7 = arith.constant 0 : index
    %c384 = arith.constant 384 : index
    %5 = vector.load %arg3[%c0_7, %c384] : memref<32x768xf32, #tpu.memory_space<vmem>>, vector<32x8xf32>
    %c0_8 = arith.constant 0 : index
    %c512 = arith.constant 512 : index
    %6 = vector.load %arg3[%c0_8, %c512] : memref<32x768xf32, #tpu.memory_space<vmem>>, vector<32x32xf32>
    %c0_9 = arith.constant 0 : index
    %c640 = arith.constant 640 : index
    %7 = vector.load %arg3[%c0_9, %c640] : memref<32x768xf32, #tpu.memory_space<vmem>>, vector<16x32xf32>
    %c0_10 = arith.constant 0 : index
    %c0_11 = arith.constant 0 : index
    %8 = vector.load %arg4[%c0_10, %c0_11] : memref<32x5xf32, #tpu.memory_space<vmem>>, vector<32x1xf32>
    %c0_12 = arith.constant 0 : index
    %c1 = arith.constant 1 : index
    %9 = vector.load %arg4[%c0_12, %c1] : memref<32x5xf32, #tpu.memory_space<vmem>>, vector<32x1xf32>
    %c0_13 = arith.constant 0 : index
    %c2 = arith.constant 2 : index
    %10 = vector.load %arg4[%c0_13, %c2] : memref<32x5xf32, #tpu.memory_space<vmem>>, vector<32x1xf32>
    %c0_14 = arith.constant 0 : index
    %c3 = arith.constant 3 : index
    %11 = vector.load %arg4[%c0_14, %c3] : memref<32x5xf32, #tpu.memory_space<vmem>>, vector<32x1xf32>
    %c0_15 = arith.constant 0 : index
    %c4 = arith.constant 4 : index
    %12 = vector.load %arg4[%c0_15, %c4] : memref<32x5xf32, #tpu.memory_space<vmem>>, vector<16x1xf32>
    %cst = arith.constant dense<0.000000e+00> : vector<32x128xf32>
    %13 = tpu.matmul %2, %0, %cst {dimension_numbers = #tpu.dot_dimension_numbers<[1], [0], [0], [1], [0, 0, 1, 1], [], []>} : vector<32x16xf32>, vector<16x128xf32>, vector<32x128xf32> -> vector<32x128xf32>
    %14 = vector.broadcast %8 : vector<32x1xf32> to vector<32x128xf32>
    %15 = arith.addf %13, %14 : vector<32x128xf32>
    %cst_16 = arith.constant 0.000000e+00 : f32
    %16 = vector.broadcast %cst_16 : f32 to vector<32x128xf32>
    %17 = arith.maximumf %15, %16 : vector<32x128xf32>
    %18 = math.absf %15 : vector<32x128xf32>
    %cst_17 = arith.constant 0.000000e+00 : f32
    %19 = vector.broadcast %cst_17 : f32 to vector<32x128xf32>
    %20 = arith.subf %19, %18 : vector<32x128xf32>
    %21 = math.exp %20 : vector<32x128xf32>
    %22 = math.log1p %21 : vector<32x128xf32>
    %23 = arith.addf %17, %22 : vector<32x128xf32>
    %cst_18 = arith.constant dense<0.000000e+00> : vector<32x128xf32>
    %24 = tpu.matmul %3, %23, %cst_18 {dimension_numbers = #tpu.dot_dimension_numbers<[1], [0], [0], [1], [0, 0, 1, 1], [], []>} : vector<32x32xf32>, vector<32x128xf32>, vector<32x128xf32> -> vector<32x128xf32>
    %25 = vector.broadcast %9 : vector<32x1xf32> to vector<32x128xf32>
    %26 = arith.addf %24, %25 : vector<32x128xf32>
    %cst_19 = arith.constant 0.000000e+00 : f32
    %27 = vector.broadcast %cst_19 : f32 to vector<32x128xf32>
    %28 = arith.maximumf %26, %27 : vector<32x128xf32>
    %29 = math.absf %26 : vector<32x128xf32>
    %cst_20 = arith.constant 0.000000e+00 : f32
    %30 = vector.broadcast %cst_20 : f32 to vector<32x128xf32>
    %31 = arith.subf %30, %29 : vector<32x128xf32>
    %32 = math.exp %31 : vector<32x128xf32>
    %33 = math.log1p %32 : vector<32x128xf32>
    %34 = arith.addf %28, %33 : vector<32x128xf32>
    %cst_21 = arith.constant dense<0.000000e+00> : vector<32x128xf32>
    %35 = tpu.matmul %4, %34, %cst_21 {dimension_numbers = #tpu.dot_dimension_numbers<[1], [0], [0], [1], [0, 0, 1, 1], [], []>} : vector<32x32xf32>, vector<32x128xf32>, vector<32x128xf32> -> vector<32x128xf32>
    %cst_22 = arith.constant dense<0.000000e+00> : vector<32x128xf32>
    %36 = tpu.matmul %5, %1, %cst_22 {dimension_numbers = #tpu.dot_dimension_numbers<[1], [0], [0], [1], [0, 0, 1, 1], [], []>} : vector<32x8xf32>, vector<8x128xf32>, vector<32x128xf32> -> vector<32x128xf32>
    %37 = arith.addf %35, %36 : vector<32x128xf32>
    %38 = vector.broadcast %10 : vector<32x1xf32> to vector<32x128xf32>
    %39 = arith.addf %37, %38 : vector<32x128xf32>
    %cst_23 = arith.constant 0.000000e+00 : f32
    %40 = vector.broadcast %cst_23 : f32 to vector<32x128xf32>
    %41 = arith.maximumf %39, %40 : vector<32x128xf32>
    %42 = math.absf %39 : vector<32x128xf32>
    %cst_24 = arith.constant 0.000000e+00 : f32
    %43 = vector.broadcast %cst_24 : f32 to vector<32x128xf32>
    %44 = arith.subf %43, %42 : vector<32x128xf32>
    %45 = math.exp %44 : vector<32x128xf32>
    %46 = math.log1p %45 : vector<32x128xf32>
    %47 = arith.addf %41, %46 : vector<32x128xf32>
    %cst_25 = arith.constant dense<0.000000e+00> : vector<32x128xf32>
    %48 = tpu.matmul %6, %47, %cst_25 {dimension_numbers = #tpu.dot_dimension_numbers<[1], [0], [0], [1], [0, 0, 1, 1], [], []>} : vector<32x32xf32>, vector<32x128xf32>, vector<32x128xf32> -> vector<32x128xf32>
    %49 = vector.broadcast %11 : vector<32x1xf32> to vector<32x128xf32>
    %50 = arith.addf %48, %49 : vector<32x128xf32>
    %cst_26 = arith.constant 0.000000e+00 : f32
    %51 = vector.broadcast %cst_26 : f32 to vector<32x128xf32>
    %52 = arith.maximumf %50, %51 : vector<32x128xf32>
    %53 = math.absf %50 : vector<32x128xf32>
    %cst_27 = arith.constant 0.000000e+00 : f32
    %54 = vector.broadcast %cst_27 : f32 to vector<32x128xf32>
    %55 = arith.subf %54, %53 : vector<32x128xf32>
    %56 = math.exp %55 : vector<32x128xf32>
    %57 = math.log1p %56 : vector<32x128xf32>
    %58 = arith.addf %52, %57 : vector<32x128xf32>
    %cst_28 = arith.constant dense<0.000000e+00> : vector<16x128xf32>
    %59 = tpu.matmul %7, %58, %cst_28 {dimension_numbers = #tpu.dot_dimension_numbers<[1], [0], [0], [1], [0, 0, 1, 1], [], []>} : vector<16x32xf32>, vector<32x128xf32>, vector<16x128xf32> -> vector<16x128xf32>
    %60 = vector.broadcast %12 : vector<16x1xf32> to vector<16x128xf32>
    %61 = arith.addf %59, %60 : vector<16x128xf32>
    %c0_29 = arith.constant 0 : index
    %c0_30 = arith.constant 0 : index
    %62 = vector.load %arg5[%c0_29, %c0_30] : memref<16x128xf32, #tpu.memory_space<vmem>>, vector<16x128xf32>
    tpu.vector_store %arg5[%c0_29, %c0_30], %61 {strides = array<i32>} : memref<16x128xf32, #tpu.memory_space<vmem>>, vector<16x128xf32>,
    return
  }
  func.func @transform_0(%arg0: i32) -> (i32, i32) {
    %c0_i32 = arith.constant 0 : i32
    %c0_i32_0 = arith.constant 0 : i32
    return %c0_i32, %arg0 : i32, i32
  }
  func.func @transform_1(%arg0: i32) -> (i32, i32) {
    %c0_i32 = arith.constant 0 : i32
    %c0_i32_0 = arith.constant 0 : i32
    return %c0_i32, %arg0 : i32, i32
  }
  func.func @transform_2(%arg0: i32) -> (i32, i32) {
    %c0_i32 = arith.constant 0 : i32
    %c0_i32_0 = arith.constant 0 : i32
    %c0_i32_1 = arith.constant 0 : i32
    return %c0_i32, %c0_i32_0 : i32, i32
  }
  func.func @transform_3(%arg0: i32) -> (i32, i32) {
    %c0_i32 = arith.constant 0 : i32
    %c0_i32_0 = arith.constant 0 : i32
    %c0_i32_1 = arith.constant 0 : i32
    return %c0_i32, %c0_i32_0 : i32, i32
  }
  func.func @transform_4(%arg0: i32) -> (i32, i32) {
    %c0_i32 = arith.constant 0 : i32
    %c0_i32_0 = arith.constant 0 : i32
    return %c0_i32, %arg0 : i32, i32
  }
}

</mosaic_0001>

<llo_original>
// kernel: autoencoder_forward.1
$region0: #{autoencoder_forward.1}
  #allocation0 [shape = 'u32[]', space=smem, size = 0x4, offset = 0x4, fixed_abs, tag = 'smem constant byte address 0x4 - core index']
  #allocation1 [shape = 'u32[72,128]{1,0:T(1,128)}', space=vmem, size = 0x9000, scoped, tag = 'internal scratch']
  %s0 = inlined_call_operand.vmem [shape: f32[16,128], index: 0, kind: input, shape index: {}]
  %s1 = inlined_call_operand.vmem [shape: f32[8,128], index: 1, kind: input, shape index: {}]
  %s2 = inlined_call_operand.vmem [shape: f32[32,768], index: 2, kind: input, shape index: {}]
  %s3 = inlined_call_operand.vmem [shape: f32[32,5], index: 3, kind: input, shape index: {}]
  %s4 = inlined_call_operand.vmem [shape: f32[16,128], index: 4, kind: output, shape index: {}]
  %s5 = sld [smem:[#allocation0]]
  $region26: #{autoencoder_forward.1} parent=0
    _
  %s7 = ssub.s32 1, %s5
  %s8 = scalar_select 0, %s7, %s5
  // Predicated region
  $region2: #{autoencoder_forward.1} parent=0 // pred_check
    _
  $region3: #{autoencoder_forward.1} parent=0 // pred_check_branch
    %10 = sbr.rel (0) target = $region5
  $region4: #{autoencoder_forward.1} parent=0 // pred_region
    _
  $region5: #{autoencoder_forward.1} parent=0 // pred_fallthru
    _
  // Predicated region
  $region6: #{autoencoder_forward.1} parent=0 // pred_check
    _
  $region7: #{autoencoder_forward.1} parent=0 // pred_check_branch
    %12 = sbr.rel (0) target = $region9
  $region8: #{autoencoder_forward.1} parent=0 // pred_region
    _
  $region9: #{autoencoder_forward.1} parent=0 // pred_fallthru
    _
  // Predicated region
  $region10: #{autoencoder_forward.1} parent=0 // pred_check
    _
  $region11: #{autoencoder_forward.1} parent=0 // pred_check_branch
    %14 = sbr.rel (0) target = $region13
  $region12: #{autoencoder_forward.1} parent=0 // pred_region
    _
  $region13: #{autoencoder_forward.1} parent=0 // pred_fallthru
    _
  // Predicated region
  $region14: #{autoencoder_forward.1} parent=0 // pred_check
    _
  $region15: #{autoencoder_forward.1} parent=0 // pred_check_branch
    %16 = sbr.rel (0) target = $region17
  $region16: #{autoencoder_forward.1} parent=0 // pred_region
    _
  $region17: #{autoencoder_forward.1} parent=0 // pred_fallthru
    _
  %v17 = vld [vmem:[%s0] sm:$0xff]
  %v18 = vld [vmem:[%s0 + $0x8] sm:$0xff]
  %v19 = vld [vmem:[%s1] sm:$0xff]
  %v20 = vld [vmem:[%s2] sm:$0xff]
  %v21 = vld [vmem:[%s2 + $0x30] sm:$0xff]
  %v22 = vld [vmem:[%s2 + $0x60] sm:$0xff]
  %v23 = vld [vmem:[%s2 + $0x90] sm:$0xff]
  %v24 = vld [vmem:[%s2 + $0x8] sm:$0xff]
  %v25 = vld [vmem:[%s2 + $0x38] sm:$0xff]
  %v26 = vld [vmem:[%s2 + $0x68] sm:$0xff]
  %v27 = vld [vmem:[%s2 + $0x98] sm:$0xff]
  %v28 = vld [vmem:[%s2 + $0x10] sm:$0xff]
  %v29 = vld [vmem:[%s2 + $0x40] sm:$0xff]
  %v30 = vld [vmem:[%s2 + $0x70] sm:$0xff]
  %v31 = vld [vmem:[%s2 + $0xa0] sm:$0xff]
  %v32 = vld [vmem:[%s2 + $0x18] sm:$0xff]
  %v33 = vld [vmem:[%s2 + $0x48] sm:$0xff]
  %v34 = vld [vmem:[%s2 + $0x78] sm:$0xff]
  %v35 = vld [vmem:[%s2 + $0xa8] sm:$0xff]
  %v36 = vld [vmem:[%s2 + $0x20] sm:$0xff]
  %v37 = vld [vmem:[%s2 + $0x50] sm:$0xff]
  %v38 = vld [vmem:[%s2 + $0x80] sm:$0xff]
  %v39 = vld [vmem:[%s2 + $0xb0] sm:$0xff]
  %v40 = vld [vmem:[%s2 + $0x28] sm:$0xff]
  %v41 = vld [vmem:[%s2 + $0x58] sm:$0xff]
  %v42 = vld [vmem:[%s3] sm:$0xff]
  %v43 = vld [vmem:[%s3 + $0x8] sm:$0xff]
  %v44 = vld [vmem:[%s3 + $0x10] sm:$0xff]
  %v45 = vld [vmem:[%s3 + $0x18] sm:$0xff]
  %47 = vset.pattern.permute.xlu0 0
  %48 = vperm.xlu0 %47, %v42
  %v49 = vpop.permute.xlu0 %48
  %52 = vset.pattern.permute.xlu0 0
  %53 = vperm.xlu0 %52, %v43
  %v54 = vpop.permute.xlu0 %53
  %57 = vset.pattern.permute.xlu0 0
  %58 = vperm.xlu0 %57, %v44
  %v59 = vpop.permute.xlu0 %58
  %62 = vset.pattern.permute.xlu0 0
  %63 = vperm.xlu0 %62, %v45
  %v64 = vpop.permute.xlu0 %63
  %vm66 = vcmask 130048
  %v68 = vsel %vm66, %v20, 0
  %v71 = vsel %vm66, %v21, 0
  %v74 = vsel %vm66, %v22, 0
  %v77 = vsel %vm66, %v23, 0
  %79 = vmatpush.msra.mxu0 0.0
  %80 = vmatpush.msra.mxu0 0.0
  %81 = vmatpush.msra.mxu0 0.0
  %82 = vmatpush.msra.mxu0 0.0
  %83 = vmatpush.msra.mxu0 0.0
  %84 = vmatpush.msra.mxu0 0.0
  %85 = vmatpush.msra.mxu0 0.0
  %86 = vmatpush.msra.mxu0 0.0
  %87 = vmatpush.msra.mxu0 0.0
  %88 = vmatpush.msra.mxu0 0.0
  %89 = vmatpush.msra.mxu0 0.0
  %90 = vmatpush.msra.mxu0 0.0
  %91 = vmatpush.msra.mxu0 0.0
  %92 = vmatpush.msra.mxu0 0.0
  %93 = vmatpush.msra.mxu0 %v18
  %94 = vmatpush.msra.mxu0 %v17
  %95 = vmatmul.f32.gmra.mxu0 %v68
  %v96 = vpop.f32.mrf.mxu0
  %v97 = vadd.f32 %v49, %v96
  %98 = vmatmul.f32.gmra.mxu0 %v71
  %v99 = vpop.f32.mrf.mxu0
  %v100 = vadd.f32 %v54, %v99
  %101 = vmatmul.f32.gmra.mxu0 %v74
  %v102 = vpop.f32.mrf.mxu0
  %v103 = vadd.f32 %v59, %v102
  %104 = vmatmul.f32.gmra.mxu0 %v77
  %v105 = vpop.f32.mrf.mxu0
  %v106 = vadd.f32 %v64, %v105
  %107 = vdwg.mxu0
  %v108 = vmax.f32 %v97, 0.0
  %v109 = vmax.f32 %v100, 0.0
  %v110 = vmax.f32 %v103, 0.0
  %v111 = vmax.f32 %v106, 0.0
  %v112 = vand.u32 2147483647, %v97
  %v113 = vand.u32 2147483647, %v100
  %v114 = vand.u32 2147483647, %v103
  %v115 = vand.u32 2147483647, %v106
  %v116 = vsub.f32 0.0, %v112
  %v117 = vsub.f32 0.0, %v113
  %v118 = vsub.f32 0.0, %v114
  %v119 = vsub.f32 0.0, %v115
  %v120 = vmul.f32 %v116, 1.442695
  %v121 = vpow.pop %v120
  %v122 = vmul.f32 %v117, 1.442695
  %v123 = vpow.pop %v122
  %v124 = vmul.f32 %v118, 1.442695
  %v125 = vpow.pop %v124
  %v126 = vmul.f32 %v119, 1.442695
  %v127 = vpow.pop %v126
  %v128 = vadd.f32 %v121, 1.0
  %v129 = vlog2.pop %v128
  %v130 = vmul.f32 %v129, 0.6931472
  %v131 = vmul.f32 -0.5, %v121
  %v132 = vadd.f32 %v131, 1.0
  %v133 = vmul.f32 %v132, %v121
  %v134 = vand.u32 2147483647, %v121
  %vm135 = vcmp.lt.f32.partialorder %v134, 0.0004427343
  %v136 = vsel %vm135, %v133, %v130
  %v137 = vadd.f32 %v123, 1.0
  %v138 = vlog2.pop %v137
  %v139 = vmul.f32 %v138, 0.6931472
  %v140 = vmul.f32 -0.5, %v123
  %v141 = vadd.f32 %v140, 1.0
  %v142 = vmul.f32 %v141, %v123
  %v143 = vand.u32 2147483647, %v123
  %vm144 = vcmp.lt.f32.partialorder %v143, 0.0004427343
  %v145 = vsel %vm144, %v142, %v139
  %v146 = vadd.f32 %v125, 1.0
  %v147 = vlog2.pop %v146
  %v148 = vmul.f32 %v147, 0.6931472
  %v149 = vmul.f32 -0.5, %v125
  %v150 = vadd.f32 %v149, 1.0
  %v151 = vmul.f32 %v150, %v125
  %v152 = vand.u32 2147483647, %v125
  %vm153 = vcmp.lt.f32.partialorder %v152, 0.0004427343
  %v154 = vsel %vm153, %v151, %v148
  %v155 = vadd.f32 %v127, 1.0
  %v156 = vlog2.pop %v155
  %v157 = vmul.f32 %v156, 0.6931472
  %v158 = vmul.f32 -0.5, %v127
  %v159 = vadd.f32 %v158, 1.0
  %v160 = vmul.f32 %v159, %v127
  %v161 = vand.u32 2147483647, %v127
  %vm162 = vcmp.lt.f32.partialorder %v161, 0.0004427343
  %v163 = vsel %vm162, %v160, %v157
  %v164 = vadd.f32 %v108, %v136
  %v165 = vadd.f32 %v109, %v145
  %v166 = vadd.f32 %v110, %v154
  %v167 = vadd.f32 %v111, %v163
  %168 = vset.pattern.permute.xlu0 1
  %169 = vperm.xlu0 %168, %v42
  %v170 = vpop.permute.xlu0 %169
  %172 = vset.pattern.permute.xlu0 1
  %173 = vperm.xlu0 %172, %v43
  %v174 = vpop.permute.xlu0 %173
  %176 = vset.pattern.permute.xlu0 1
  %177 = vperm.xlu0 %176, %v44
  %v178 = vpop.permute.xlu0 %177
  %180 = vset.pattern.permute.xlu0 1
  %181 = vperm.xlu0 %180, %v45
  %v182 = vpop.permute.xlu0 %181
  %vm184 = vcmask 261120
  %v186 = vsel %vm184, %v24, 0
  %v189 = vsel %vm184, %v25, 0
  %v192 = vsel %vm184, %v26, 0
  %v195 = vsel %vm184, %v27, 0
  %197 = vmatpush.msra.mxu0 0.0
  %198 = vmatpush.msra.mxu0 0.0
  %199 = vmatpush.msra.mxu0 0.0
  %200 = vmatpush.msra.mxu0 0.0
  %201 = vmatpush.msra.mxu0 0.0
  %202 = vmatpush.msra.mxu0 0.0
  %203 = vmatpush.msra.mxu0 0.0
  %204 = vmatpush.msra.mxu0 0.0
  %205 = vmatpush.msra.mxu0 0.0
  %206 = vmatpush.msra.mxu0 0.0
  %207 = vmatpush.msra.mxu0 0.0
  %208 = vmatpush.msra.mxu0 0.0
  %209 = vmatpush.msra.mxu0 %v167
  %210 = vmatpush.msra.mxu0 %v166
  %211 = vmatpush.msra.mxu0 %v165
  %212 = vmatpush.msra.mxu0 %v164
  %213 = vmatmul.f32.gmra.mxu0 %v186
  %v214 = vpop.f32.mrf.mxu0
  %v215 = vadd.f32 %v170, %v214
  %216 = vmatmul.f32.gmra.mxu0 %v189
  %v217 = vpop.f32.mrf.mxu0
  %v218 = vadd.f32 %v174, %v217
  %219 = vmatmul.f32.gmra.mxu0 %v192
  %v220 = vpop.f32.mrf.mxu0
  %v221 = vadd.f32 %v178, %v220
  %222 = vmatmul.f32.gmra.mxu0 %v195
  %v223 = vpop.f32.mrf.mxu0
  %v224 = vadd.f32 %v182, %v223
  %225 = vdwg.mxu0
  %v226 = vmax.f32 %v215, 0.0
  %v227 = vmax.f32 %v218, 0.0
  %v228 = vmax.f32 %v221, 0.0
  %v229 = vmax.f32 %v224, 0.0
  %v230 = vand.u32 2147483647, %v215
  %v231 = vand.u32 2147483647, %v218
  %v232 = vand.u32 2147483647, %v221
  %v233 = vand.u32 2147483647, %v224
  %v234 = vsub.f32 0.0, %v230
  %v235 = vsub.f32 0.0, %v231
  %v236 = vsub.f32 0.0, %v232
  %v237 = vsub.f32 0.0, %v233
  %v238 = vmul.f32 %v234, 1.442695
  %v239 = vpow.pop %v238
  %v240 = vmul.f32 %v235, 1.442695
  %v241 = vpow.pop %v240
  %v242 = vmul.f32 %v236, 1.442695
  %v243 = vpow.pop %v242
  %v244 = vmul.f32 %v237, 1.442695
  %v245 = vpow.pop %v244
  %v246 = vadd.f32 %v239, 1.0
  %v247 = vlog2.pop %v246
  %v248 = vmul.f32 %v247, 0.6931472
  %v249 = vmul.f32 -0.5, %v239
  %v250 = vadd.f32 %v249, 1.0
  %v251 = vmul.f32 %v250, %v239
  %v252 = vand.u32 2147483647, %v239
  %vm253 = vcmp.lt.f32.partialorder %v252, 0.0004427343
  %v254 = vsel %vm253, %v251, %v248
  %v255 = vadd.f32 %v241, 1.0
  %v256 = vlog2.pop %v255
  %v257 = vmul.f32 %v256, 0.6931472
  %v258 = vmul.f32 -0.5, %v241
  %v259 = vadd.f32 %v258, 1.0
  %v260 = vmul.f32 %v259, %v241
  %v261 = vand.u32 2147483647, %v241
  %vm262 = vcmp.lt.f32.partialorder %v261, 0.0004427343
  %v263 = vsel %vm262, %v260, %v257
  %v264 = vadd.f32 %v243, 1.0
  %v265 = vlog2.pop %v264
  %v266 = vmul.f32 %v265, 0.6931472
  %v267 = vmul.f32 -0.5, %v243
  %v268 = vadd.f32 %v267, 1.0
  %v269 = vmul.f32 %v268, %v243
  %v270 = vand.u32 2147483647, %v243
  %vm271 = vcmp.lt.f32.partialorder %v270, 0.0004427343
  %v272 = vsel %vm271, %v269, %v266
  %v273 = vadd.f32 %v245, 1.0
  %v274 = vlog2.pop %v273
  %v275 = vmul.f32 %v274, 0.6931472
  %v276 = vmul.f32 -0.5, %v245
  %v277 = vadd.f32 %v276, 1.0
  %v278 = vmul.f32 %v277, %v245
  %v279 = vand.u32 2147483647, %v245
  %vm280 = vcmp.lt.f32.partialorder %v279, 0.0004427343
  %v281 = vsel %vm280, %v278, %v275
  %v282 = vadd.f32 %v226, %v254
  %v283 = vadd.f32 %v227, %v263
  %v284 = vadd.f32 %v228, %v272
  %v285 = vadd.f32 %v229, %v281
  %vm286 = vcmask 64512
  %v288 = vsel %vm286, %v32, 0
  %v291 = vsel %vm286, %v33, 0
  %v294 = vsel %vm286, %v34, 0
  %v297 = vsel %vm286, %v35, 0
  %299 = vmatpush.msra.mxu0 0.0
  %300 = vmatpush.msra.mxu0 0.0
  %301 = vmatpush.msra.mxu0 0.0
  %302 = vmatpush.msra.mxu0 0.0
  %303 = vmatpush.msra.mxu0 0.0
  %304 = vmatpush.msra.mxu0 0.0
  %305 = vmatpush.msra.mxu0 0.0
  %306 = vmatpush.msra.mxu0 0.0
  %307 = vmatpush.msra.mxu0 0.0
  %308 = vmatpush.msra.mxu0 0.0
  %309 = vmatpush.msra.mxu0 0.0
  %310 = vmatpush.msra.mxu0 0.0
  %311 = vmatpush.msra.mxu0 0.0
  %312 = vmatpush.msra.mxu0 0.0
  %313 = vmatpush.msra.mxu0 0.0
  %314 = vmatpush.msra.mxu0 %v19
  %315 = vmatmul.f32.gmra.mxu0 %v288
  %v316 = vpop.f32.mrf.mxu0
  %v317 = vadd.f32 0.0, %v316
  %318 = vmatmul.f32.gmra.mxu0 %v291
  %v319 = vpop.f32.mrf.mxu0
  %v320 = vadd.f32 0.0, %v319
  %321 = vmatmul.f32.gmra.mxu0 %v294
  %v322 = vpop.f32.mrf.mxu0
  %v323 = vadd.f32 0.0, %v322
  %324 = vmatmul.f32.gmra.mxu0 %v297
  %v325 = vpop.f32.mrf.mxu0
  %v326 = vadd.f32 0.0, %v325
  %327 = vdwg.mxu0
  %v329 = vsel %vm184, %v28, 0
  %v332 = vsel %vm184, %v29, 0
  %v335 = vsel %vm184, %v30, 0
  %v338 = vsel %vm184, %v31, 0
  %340 = vmatpush.msra.mxu0 0.0
  %341 = vmatpush.msra.mxu0 0.0
  %342 = vmatpush.msra.mxu0 0.0
  %343 = vmatpush.msra.mxu0 0.0
  %344 = vmatpush.msra.mxu0 0.0
  %345 = vmatpush.msra.mxu0 0.0
  %346 = vmatpush.msra.mxu0 0.0
  %347 = vmatpush.msra.mxu0 0.0
  %348 = vmatpush.msra.mxu0 0.0
  %349 = vmatpush.msra.mxu0 0.0
  %350 = vmatpush.msra.mxu0 0.0
  %351 = vmatpush.msra.mxu0 0.0
  %352 = vmatpush.msra.mxu0 %v285
  %353 = vmatpush.msra.mxu0 %v284
  %354 = vmatpush.msra.mxu0 %v283
  %355 = vmatpush.msra.mxu0 %v282
  %356 = vmatmul.f32.gmra.mxu0 %v329
  %v357 = vpop.f32.mrf.mxu0
  %v358 = vadd.f32 %v317, %v357
  %359 = vmatmul.f32.gmra.mxu0 %v332
  %v360 = vpop.f32.mrf.mxu0
  %v361 = vadd.f32 %v320, %v360
  %362 = vmatmul.f32.gmra.mxu0 %v335
  %v363 = vpop.f32.mrf.mxu0
  %v364 = vadd.f32 %v323, %v363
  %365 = vmatmul.f32.gmra.mxu0 %v338
  %v366 = vpop.f32.mrf.mxu0
  %v367 = vadd.f32 %v326, %v366
  %368 = vdwg.mxu0
  %369 = vset.pattern.permute.xlu0 2
  %370 = vperm.xlu0 %369, %v42
  %v371 = vpop.permute.xlu0 %370
  %373 = vset.pattern.permute.xlu0 2
  %374 = vperm.xlu0 %373, %v43
  %v375 = vpop.permute.xlu0 %374
  %377 = vset.pattern.permute.xlu0 2
  %378 = vperm.xlu0 %377, %v44
  %v379 = vpop.permute.xlu0 %378
  %381 = vset.pattern.permute.xlu0 2
  %382 = vperm.xlu0 %381, %v45
  %v383 = vpop.permute.xlu0 %382
  %v385 = vadd.f32 %v358, %v371
  %v386 = vadd.f32 %v361, %v375
  %v387 = vadd.f32 %v364, %v379
  %v388 = vadd.f32 %v367, %v383
  %v389 = vmax.f32 %v385, 0.0
  %v390 = vmax.f32 %v386, 0.0
  %v391 = vmax.f32 %v387, 0.0
  %v392 = vmax.f32 %v388, 0.0
  %v393 = vand.u32 2147483647, %v385
  %v394 = vand.u32 2147483647, %v386
  %v395 = vand.u32 2147483647, %v387
  %v396 = vand.u32 2147483647, %v388
  %v397 = vsub.f32 0.0, %v393
  %v398 = vsub.f32 0.0, %v394
  %v399 = vsub.f32 0.0, %v395
  %v400 = vsub.f32 0.0, %v396
  %v401 = vmul.f32 %v397, 1.442695
  %v402 = vpow.pop %v401
  %v403 = vmul.f32 %v398, 1.442695
  %v404 = vpow.pop %v403
  %v405 = vmul.f32 %v399, 1.442695
  %v406 = vpow.pop %v405
  %v407 = vmul.f32 %v400, 1.442695
  %v408 = vpow.pop %v407
  %v409 = vadd.f32 %v402, 1.0
  %v410 = vlog2.pop %v409
  %v411 = vmul.f32 %v410, 0.6931472
  %v412 = vmul.f32 -0.5, %v402
  %v413 = vadd.f32 %v412, 1.0
  %v414 = vmul.f32 %v413, %v402
  %v415 = vand.u32 2147483647, %v402
  %vm416 = vcmp.lt.f32.partialorder %v415, 0.0004427343
  %v417 = vsel %vm416, %v414, %v411
  %v418 = vadd.f32 %v404, 1.0
  %v419 = vlog2.pop %v418
  %v420 = vmul.f32 %v419, 0.6931472
  %v421 = vmul.f32 -0.5, %v404
  %v422 = vadd.f32 %v421, 1.0
  %v423 = vmul.f32 %v422, %v404
  %v424 = vand.u32 2147483647, %v404
  %vm425 = vcmp.lt.f32.partialorder %v424, 0.0004427343
  %v426 = vsel %vm425, %v423, %v420
  %v427 = vadd.f32 %v406, 1.0
  %v428 = vlog2.pop %v427
  %v429 = vmul.f32 %v428, 0.6931472
  %v430 = vmul.f32 -0.5, %v406
  %v431 = vadd.f32 %v430, 1.0
  %v432 = vmul.f32 %v431, %v406
  %v433 = vand.u32 2147483647, %v406
  %vm434 = vcmp.lt.f32.partialorder %v433, 0.0004427343
  %v435 = vsel %vm434, %v432, %v429
  %v436 = vadd.f32 %v408, 1.0
  %v437 = vlog2.pop %v436
  %v438 = vmul.f32 %v437, 0.6931472
  %v439 = vmul.f32 -0.5, %v408
  %v440 = vadd.f32 %v439, 1.0
  %v441 = vmul.f32 %v440, %v408
  %v442 = vand.u32 2147483647, %v408
  %vm443 = vcmp.lt.f32.partialorder %v442, 0.0004427343
  %v444 = vsel %vm443, %v441, %v438
  %v445 = vadd.f32 %v389, %v417
  %v446 = vadd.f32 %v390, %v426
  %v447 = vadd.f32 %v391, %v435
  %v448 = vadd.f32 %v392, %v444
  %449 = vset.pattern.permute.xlu0 3
  %450 = vperm.xlu0 %449, %v42
  %v451 = vpop.permute.xlu0 %450
  %453 = vset.pattern.permute.xlu0 3
  %454 = vperm.xlu0 %453, %v43
  %v455 = vpop.permute.xlu0 %454
  %457 = vset.pattern.permute.xlu0 3
  %458 = vperm.xlu0 %457, %v44
  %v459 = vpop.permute.xlu0 %458
  %461 = vset.pattern.permute.xlu0 3
  %462 = vperm.xlu0 %461, %v45
  %v463 = vpop.permute.xlu0 %462
  %v466 = vsel %vm184, %v36, 0
  %v469 = vsel %vm184, %v37, 0
  %v472 = vsel %vm184, %v38, 0
  %v475 = vsel %vm184, %v39, 0
  %477 = vmatpush.msra.mxu0 0.0
  %478 = vmatpush.msra.mxu0 0.0
  %479 = vmatpush.msra.mxu0 0.0
  %480 = vmatpush.msra.mxu0 0.0
  %481 = vmatpush.msra.mxu0 0.0
  %482 = vmatpush.msra.mxu0 0.0
  %483 = vmatpush.msra.mxu0 0.0
  %484 = vmatpush.msra.mxu0 0.0
  %485 = vmatpush.msra.mxu0 0.0
  %486 = vmatpush.msra.mxu0 0.0
  %487 = vmatpush.msra.mxu0 0.0
  %488 = vmatpush.msra.mxu0 0.0
  %489 = vmatpush.msra.mxu0 %v448
  %490 = vmatpush.msra.mxu0 %v447
  %491 = vmatpush.msra.mxu0 %v446
  %492 = vmatpush.msra.mxu0 %v445
  %493 = vmatmul.f32.gmra.mxu0 %v466
  %v494 = vpop.f32.mrf.mxu0
  %v495 = vadd.f32 %v451, %v494
  %496 = vmatmul.f32.gmra.mxu0 %v469
  %v497 = vpop.f32.mrf.mxu0
  %v498 = vadd.f32 %v455, %v497
  %499 = vmatmul.f32.gmra.mxu0 %v472
  %v500 = vpop.f32.mrf.mxu0
  %v501 = vadd.f32 %v459, %v500
  %502 = vmatmul.f32.gmra.mxu0 %v475
  %v503 = vpop.f32.mrf.mxu0
  %v504 = vadd.f32 %v463, %v503
  %505 = vdwg.mxu0
  %v506 = vmax.f32 %v495, 0.0
  %v507 = vmax.f32 %v498, 0.0
  %v508 = vmax.f32 %v501, 0.0
  %v509 = vmax.f32 %v504, 0.0
  %v510 = vand.u32 2147483647, %v495
  %v511 = vand.u32 2147483647, %v498
  %v512 = vand.u32 2147483647, %v501
  %v513 = vand.u32 2147483647, %v504
  %v514 = vsub.f32 0.0, %v510
  %v515 = vsub.f32 0.0, %v511
  %v516 = vsub.f32 0.0, %v512
  %v517 = vsub.f32 0.0, %v513
  %v518 = vmul.f32 %v514, 1.442695
  %v519 = vpow.pop %v518
  %v520 = vmul.f32 %v515, 1.442695
  %v521 = vpow.pop %v520
  %v522 = vmul.f32 %v516, 1.442695
  %v523 = vpow.pop %v522
  %v524 = vmul.f32 %v517, 1.442695
  %v525 = vpow.pop %v524
  %v526 = vadd.f32 %v519, 1.0
  %v527 = vlog2.pop %v526
  %v528 = vmul.f32 %v527, 0.6931472
  %v529 = vmul.f32 -0.5, %v519
  %v530 = vadd.f32 %v529, 1.0
  %v531 = vmul.f32 %v530, %v519
  %v532 = vand.u32 2147483647, %v519
  %vm533 = vcmp.lt.f32.partialorder %v532, 0.0004427343
  %v534 = vsel %vm533, %v531, %v528
  %v535 = vadd.f32 %v521, 1.0
  %v536 = vlog2.pop %v535
  %v537 = vmul.f32 %v536, 0.6931472
  %v538 = vmul.f32 -0.5, %v521
  %v539 = vadd.f32 %v538, 1.0
  %v540 = vmul.f32 %v539, %v521
  %v541 = vand.u32 2147483647, %v521
  %vm542 = vcmp.lt.f32.partialorder %v541, 0.0004427343
  %v543 = vsel %vm542, %v540, %v537
  %v544 = vadd.f32 %v523, 1.0
  %v545 = vlog2.pop %v544
  %v546 = vmul.f32 %v545, 0.6931472
  %v547 = vmul.f32 -0.5, %v523
  %v548 = vadd.f32 %v547, 1.0
  %v549 = vmul.f32 %v548, %v523
  %v550 = vand.u32 2147483647, %v523
  %vm551 = vcmp.lt.f32.partialorder %v550, 0.0004427343
  %v552 = vsel %vm551, %v549, %v546
  %v553 = vadd.f32 %v525, 1.0
  %v554 = vlog2.pop %v553
  %v555 = vmul.f32 %v554, 0.6931472
  %v556 = vmul.f32 -0.5, %v525
  %v557 = vadd.f32 %v556, 1.0
  %v558 = vmul.f32 %v557, %v525
  %v559 = vand.u32 2147483647, %v525
  %vm560 = vcmp.lt.f32.partialorder %v559, 0.0004427343
  %v561 = vsel %vm560, %v558, %v555
  %v562 = vadd.f32 %v506, %v534
  %v563 = vadd.f32 %v507, %v543
  %v564 = vadd.f32 %v508, %v552
  %v565 = vadd.f32 %v509, %v561
  %566 = vset.pattern.permute.xlu0 4
  %567 = vperm.xlu0 %566, %v42
  %v568 = vpop.permute.xlu0 %567
  %570 = vset.pattern.permute.xlu0 4
  %571 = vperm.xlu0 %570, %v43
  %v572 = vpop.permute.xlu0 %571
  %v575 = vsel %vm184, %v40, 0
  %v578 = vsel %vm184, %v41, 0
  %580 = vmatpush.msra.mxu0 0.0
  %581 = vmatpush.msra.mxu0 0.0
  %582 = vmatpush.msra.mxu0 0.0
  %583 = vmatpush.msra.mxu0 0.0
  %584 = vmatpush.msra.mxu0 0.0
  %585 = vmatpush.msra.mxu0 0.0
  %586 = vmatpush.msra.mxu0 0.0
  %587 = vmatpush.msra.mxu0 0.0
  %588 = vmatpush.msra.mxu0 0.0
  %589 = vmatpush.msra.mxu0 0.0
  %590 = vmatpush.msra.mxu0 0.0
  %591 = vmatpush.msra.mxu0 0.0
  %592 = vmatpush.msra.mxu0 %v565
  %593 = vmatpush.msra.mxu0 %v564
  %594 = vmatpush.msra.mxu0 %v563
  %595 = vmatpush.msra.mxu0 %v562
  %596 = vmatmul.f32.gmra.mxu0 %v575
  %v597 = vpop.f32.mrf.mxu0
  %v598 = vadd.f32 %v568, %v597
  %599 = vmatmul.f32.gmra.mxu0 %v578
  %v600 = vpop.f32.mrf.mxu0
  %v601 = vadd.f32 %v572, %v600
  %602 = vdwg.mxu0
  %603 = vst [vmem:[%s4] sm:$0xff] %v598
  %604 = vst [vmem:[%s4 + $0x8] sm:$0xff] %v601
  // Predicated region
  $region18: #{autoencoder_forward.1} parent=0 // pred_check
    _
  $region19: #{autoencoder_forward.1} parent=0 // pred_check_branch
    %606 = sbr.rel (0) target = $region21
  $region20: #{autoencoder_forward.1} parent=0 // pred_region
    _
  $region21: #{autoencoder_forward.1} parent=0 // pred_fallthru
    _
  // Predicated region
  $region22: #{autoencoder_forward.1} parent=0 // pred_check
    _
  $region23: #{autoencoder_forward.1} parent=0 // pred_check_branch
    %608 = sbr.rel (0) target = $region25
  $region24: #{autoencoder_forward.1} parent=0 // pred_region
    _
  $region25: #{autoencoder_forward.1} parent=0 // pred_fallthru
    _

</llo_original>
